<compile_context>
chip_gen: v7x
topology: tpu7x:2x2x1
jax: 0.10.0
libtpu: 0.0.40
codegen_flags: <defaults>
</compile_context>

<pallas_src>
import jax
import jax.numpy as jnp
from jax import lax
from jax.experimental import pallas as pl
from jax.experimental.pallas import tpu as pltpu

IN_F = 96        # module input features
HID = 256        # hidden width
HEAD_ROWS = 8    # w3 padded to 8 sublanes; row 0 holds the real head weights


def _disc_kernel(x_ref, w1_ref, b1_ref, w2_ref, b2_ref, w3_ref, b3_ref, o_ref):
    # Layer 1: (tb, 96) f32 -> bf16 in-kernel, MXU matmul with f32 accumulation.
    h = jnp.dot(x_ref[...].astype(jnp.bfloat16), w1_ref[...],
                preferred_element_type=jnp.float32)
    h = h + b1_ref[...]
    h = jnp.maximum(h, 0.2 * h)                      # LeakyReLU(0.2), 2 VALU ops

    # Layer 2: (tb, 256) @ (256, 256) on the MXU, bf16 operands, f32 accumulation.
    h = jnp.dot(h.astype(jnp.bfloat16), w2_ref[...],
                preferred_element_type=jnp.float32)
    h = h + b2_ref[...]
    h = jnp.maximum(h, 0.2 * h)                      # LeakyReLU(0.2)

    # Head 256 -> 1, emitted lane-dense: z[r, b] = sum_k w3[r, k] * h[b, k]
    # (NT contraction, same structure as q @ k^T). Batch lands on the lane axis,
    # so the stored (1, tb) row needs no transpose and no masked stores.
    z = lax.dot_general(w3_ref[...], h.astype(jnp.bfloat16),
                        dimension_numbers=(((1,), (1,)), ((), ())),
                        preferred_element_type=jnp.float32)       # (8, tb)
    o_ref[...] = jax.nn.sigmoid(z[0:1, :] + b3_ref[0, 0])          # (1, tb)


def discriminator_forward(x, params, tb=1024):
    """x: (B, 96) float32. params: dict(w1,b1,w2,b2,w3,b3) in f32 (PyTorch-equivalent).

    NOTE: in a real serving loop the one-time weight casts/padding below would be
    cached; they are in the wrapper here to keep the script self-contained.
    """
    B = x.shape[0]
    assert x.shape[1] == IN_F

    # Adaptive batch tile: keep tb a multiple of 128 (lane-dense output blocks),
    # cap it so the batch is never padded by more than one 128-row group.
    tb = max(128, (int(tb) // 128) * 128)
    tb = min(tb, 128 * int(pl.cdiv(B, 128)))
    n_tiles = int(pl.cdiv(B, tb))
    b_pad = n_tiles * tb

    # x stays f32 and unpadded on the feature axis; only the batch is padded
    # (at most 127 extra zero rows) so every tile is full.
    x_p = x if b_pad == B else jnp.pad(x, ((0, b_pad - B), (0, 0)))

    # One-time weight prep (bf16 for MXU operands; f32 biases; w3 row-padded to 8).
    w1 = params["w1"].astype(jnp.bfloat16)                         # (96, 256)
    b1 = params["b1"].astype(jnp.float32)                          # (1, 256)
    w2 = params["w2"].astype(jnp.bfloat16)                         # (256, 256)
    b2 = params["b2"].astype(jnp.float32)                          # (1, 256)
    w3 = jnp.zeros((HEAD_ROWS, HID), jnp.bfloat16).at[0].set(
        params["w3"].reshape(HID).astype(jnp.bfloat16))            # (8, 256)
    b3 = params["b3"].reshape(1, 1).astype(jnp.float32)            # (1, 1) -> SMEM

    def _resident(shape):
        # Same block index every grid step => fetched once, stays VMEM-resident
        # while activations stream.
        return pl.BlockSpec(shape, lambda i: (0, 0))

    out = pl.pallas_call(
        _disc_kernel,
        out_shape=jax.ShapeDtypeStruct((1, b_pad), jnp.float32),
        grid=(n_tiles,),
        in_specs=[
            pl.BlockSpec((tb, IN_F), lambda i: (i, 0)),     # x: streamed f32 tiles
            _resident((IN_F, HID)),                         # w1 (bf16)
            _resident((1, HID)),                            # b1 (f32)
            _resident((HID, HID)),                          # w2 (bf16)
            _resident((1, HID)),                            # b2 (f32)
            _resident((HEAD_ROWS, HID)),                    # w3 rows (bf16)
            pl.BlockSpec(memory_space=pltpu.MemorySpace.SMEM),  # b3 scalar in SMEM
        ],
        out_specs=pl.BlockSpec((1, tb), lambda i: (0, i)),  # lane-dense output row
        compiler_params=pltpu.CompilerParams(
            dimension_semantics=("parallel",),
        ),
    )(x_p, w1, b1, w2, b2, w3, b3)
    return out.reshape(b_pad, 1)[:B]


def init_params(key):
    """Deterministic synthetic parameters matching the PyTorch module shapes.

    PyTorch Linear(in, out) has weight (out, in); we store the transpose (in, out)
    so y = x @ W + b. Biases are stored as (1, out) rows; w3 as (256, 1), b3 as (1, 1)."""
    ks = jax.random.split(key, 6)

    def lin(kw, kb, fan_in, fan_out):
        bound = 1.0 / jnp.sqrt(fan_in)
        w = jax.random.uniform(kw, (fan_in, fan_out), jnp.float32, -bound, bound)
        b = jax.random.uniform(kb, (1, fan_out), jnp.float32, -bound, bound)
        return w, b

    w1, b1 = lin(ks[0], ks[1], 96, 256)
    w2, b2 = lin(ks[2], ks[3], 256, 256)
    w3, b3 = lin(ks[4], ks[5], 256, 1)
    return dict(w1=w1, b1=b1, w2=w2, b2=b2, w3=w3, b3=b3)


def reference_forward(x, p):
    h = x @ p["w1"] + p["b1"]
    h = jnp.where(h > 0, h, 0.2 * h)
    h = h @ p["w2"] + p["b2"]
    h = jnp.where(h > 0, h, 0.2 * h)
    z = h @ p["w3"] + p["b3"]
    return jax.nn.sigmoid(z)


if __name__ == "__main__":
    key = jax.random.PRNGKey(0)
    k_x, k_p = jax.random.split(key)
    params = init_params(k_p)

    # Small batch consistent with the module (features fixed at 96 by the spec).
    B = 8
    x = jax.random.normal(k_x, (B, IN_F), dtype=jnp.float32)
    out = jax.block_until_ready(discriminator_forward(x, params))
    ref = reference_forward(x, params)
    assert out.shape == (B, 1)
    # bf16 matmul operands (f32 accumulation) => loosened tolerance vs f32 reference.
    assert jnp.allclose(out, ref, atol=2e-2), "mismatch vs f32 reference (small batch)"

    # Exercise the multi-tile batch grid + (minimal) batch-padding path.
    B2 = 300
    x2 = jax.random.normal(jax.random.PRNGKey(1), (B2, IN_F), dtype=jnp.float32)
    out2 = jax.block_until_ready(discriminator_forward(x2, params, tb=128))
    ref2 = reference_forward(x2, params)
    assert out2.shape == (B2, 1)
    assert jnp.allclose(out2, ref2, atol=2e-2), "mismatch vs f32 reference (tiled batch)"

    print("KERNEL_OK")
</pallas_src>

<mosaic_0001>
module attributes {stable_mosaic.version = 11 : i64} {
  func.func @_disc_kernel(%arg0: i32, %arg1: memref<128x96xf32, #tpu.memory_space<vmem>>, %arg2: memref<96x256xbf16, #tpu.memory_space<vmem>>, %arg3: memref<1x256xf32, #tpu.memory_space<vmem>>, %arg4: memref<256x256xbf16, #tpu.memory_space<vmem>>, %arg5: memref<1x256xf32, #tpu.memory_space<vmem>>, %arg6: memref<8x256xbf16, #tpu.memory_space<vmem>>, %arg7: memref<1x1xf32, #tpu.memory_space<smem>>, %arg8: memref<1x128xf32, #tpu.memory_space<vmem>>) attributes {dimension_semantics = [#tpu.dimension_semantics<parallel>], iteration_bounds = array<i64: 1>, scalar_prefetch = 0 : i64, scratch_operands = 0 : i64, tpu.core_type = #tpu.core_type<tc>, window_params = [{transform_indices = @transform_0, window_bounds = array<i64: 128, 96>}, {pipeline_mode = #tpu.pipeline_mode<synchronous>, transform_indices = @transform_1, window_bounds = array<i64: 96, 256>}, {pipeline_mode = #tpu.pipeline_mode<synchronous>, transform_indices = @transform_2, window_bounds = array<i64: 1, 256>}, {pipeline_mode = #tpu.pipeline_mode<synchronous>, transform_indices = @transform_3, window_bounds = array<i64: 256, 256>}, {pipeline_mode = #tpu.pipeline_mode<synchronous>, transform_indices = @transform_4, window_bounds = array<i64: 1, 256>}, {pipeline_mode = #tpu.pipeline_mode<synchronous>, transform_indices = @transform_5, window_bounds = array<i64: 8, 256>}, {transform_indices = @transform_6, window_bounds = array<i64: 1, 1>}, {transform_indices = @transform_7, window_bounds = array<i64: 1, 128>}]} {
    %c0 = arith.constant 0 : index
    %c0_0 = arith.constant 0 : index
    %0 = vector.load %arg1[%c0, %c0_0] : memref<128x96xf32, #tpu.memory_space<vmem>>, vector<128x96xf32>
    %1 = arith.truncf %0 : vector<128x96xf32> to vector<128x96xbf16>
    %c0_1 = arith.constant 0 : index
    %c0_2 = arith.constant 0 : index
    %2 = vector.load %arg2[%c0_1, %c0_2] : memref<96x256xbf16, #tpu.memory_space<vmem>>, vector<96x256xbf16>
    %cst = arith.constant dense<0.000000e+00> : vector<128x256xf32>
    %3 = tpu.matmul %1, %2, %cst {dimension_numbers = #tpu.dot_dimension_numbers<[1], [0], [0], [1], [0, 0, 1, 1], [], []>} : vector<128x96xbf16>, vector<96x256xbf16>, vector<128x256xf32> -> vector<128x256xf32>
    %c0_3 = arith.constant 0 : index
    %c0_4 = arith.constant 0 : index
    %4 = vector.load %arg3[%c0_3, %c0_4] : memref<1x256xf32, #tpu.memory_space<vmem>>, vector<1x256xf32>
    %5 = vector.broadcast %4 : vector<1x256xf32> to vector<128x256xf32>
    %6 = arith.addf %3, %5 : vector<128x256xf32>
    %cst_5 = arith.constant 2.000000e-01 : f32
    %7 = vector.broadcast %cst_5 : f32 to vector<128x256xf32>
    %8 = arith.mulf %7, %6 : vector<128x256xf32>
    %9 = arith.maximumf %6, %8 : vector<128x256xf32>
    %10 = arith.truncf %9 : vector<128x256xf32> to vector<128x256xbf16>
    %c0_6 = arith.constant 0 : index
    %c0_7 = arith.constant 0 : index
    %11 = vector.load %arg4[%c0_6, %c0_7] : memref<256x256xbf16, #tpu.memory_space<vmem>>, vector<256x256xbf16>
    %cst_8 = arith.constant dense<0.000000e+00> : vector<128x256xf32>
    %12 = tpu.matmul %10, %11, %cst_8 {dimension_numbers = #tpu.dot_dimension_numbers<[1], [0], [0], [1], [0, 0, 1, 1], [], []>} : vector<128x256xbf16>, vector<256x256xbf16>, vector<128x256xf32> -> vector<128x256xf32>
    %c0_9 = arith.constant 0 : index
    %c0_10 = arith.constant 0 : index
    %13 = vector.load %arg5[%c0_9, %c0_10] : memref<1x256xf32, #tpu.memory_space<vmem>>, vector<1x256xf32>
    %14 = vector.broadcast %13 : vector<1x256xf32> to vector<128x256xf32>
    %15 = arith.addf %12, %14 : vector<128x256xf32>
    %cst_11 = arith.constant 2.000000e-01 : f32
    %16 = vector.broadcast %cst_11 : f32 to vector<128x256xf32>
    %17 = arith.mulf %16, %15 : vector<128x256xf32>
    %18 = arith.maximumf %15, %17 : vector<128x256xf32>
    %c0_12 = arith.constant 0 : index
    %c0_13 = arith.constant 0 : index
    %19 = vector.load %arg6[%c0_12, %c0_13] : memref<8x256xbf16, #tpu.memory_space<vmem>>, vector<8x256xbf16>
    %20 = arith.truncf %18 : vector<128x256xf32> to vector<128x256xbf16>
    %cst_14 = arith.constant dense<0.000000e+00> : vector<8x128xf32>
    %21 = tpu.matmul %19, %20, %cst_14 {dimension_numbers = #tpu.dot_dimension_numbers<[1], [1], [0], [0], [0, 0, 1, 0], [], []>} : vector<8x256xbf16>, vector<128x256xbf16>, vector<8x128xf32> -> vector<8x128xf32>
    %22 = vector.extract_strided_slice %21 {offsets = [0, 0], sizes = [1, 128], strides = [1, 1]} : vector<8x128xf32> to vector<1x128xf32>
    %c0_15 = arith.constant 0 : index
    %c0_16 = arith.constant 0 : index
    %23 = memref.load %arg7[%c0_15, %c0_16] : memref<1x1xf32, #tpu.memory_space<smem>>
    %24 = vector.broadcast %23 : f32 to vector<1x128xf32>
    %25 = arith.addf %22, %24 : vector<1x128xf32>
    %26 = arith.negf %25 : vector<1x128xf32>
    %27 = math.exp %26 : vector<1x128xf32>
    %cst_17 = arith.constant 1.000000e+00 : f32
    %28 = vector.broadcast %cst_17 : f32 to vector<1x128xf32>
    %29 = arith.addf %28, %27 : vector<1x128xf32>
    %30 = arith.divf %28, %29 : vector<1x128xf32>
    %c0_18 = arith.constant 0 : index
    %c0_19 = arith.constant 0 : index
    %31 = vector.load %arg8[%c0_18, %c0_19] : memref<1x128xf32, #tpu.memory_space<vmem>>, vector<1x128xf32>
    tpu.vector_store %arg8[%c0_18, %c0_19], %30 {strides = array<i32>} : memref<1x128xf32, #tpu.memory_space<vmem>>, vector<1x128xf32>,
    return
  }
  func.func @transform_0(%arg0: i32) -> (i32, i32) {
    %c0_i32 = arith.constant 0 : i32
    %c0_i32_0 = arith.constant 0 : i32
    return %arg0, %c0_i32 : i32, i32
  }
  func.func @transform_1(%arg0: i32) -> (i32, i32) {
    %c0_i32 = arith.constant 0 : i32
    %c0_i32_0 = arith.constant 0 : i32
    %c0_i32_1 = arith.constant 0 : i32
    return %c0_i32, %c0_i32_0 : i32, i32
  }
  func.func @transform_2(%arg0: i32) -> (i32, i32) {
    %c0_i32 = arith.constant 0 : i32
    %c0_i32_0 = arith.constant 0 : i32
    %c0_i32_1 = arith.constant 0 : i32
    return %c0_i32, %c0_i32_0 : i32, i32
  }
  func.func @transform_3(%arg0: i32) -> (i32, i32) {
    %c0_i32 = arith.constant 0 : i32
    %c0_i32_0 = arith.constant 0 : i32
    %c0_i32_1 = arith.constant 0 : i32
    return %c0_i32, %c0_i32_0 : i32, i32
  }
  func.func @transform_4(%arg0: i32) -> (i32, i32) {
    %c0_i32 = arith.constant 0 : i32
    %c0_i32_0 = arith.constant 0 : i32
    %c0_i32_1 = arith.constant 0 : i32
    return %c0_i32, %c0_i32_0 : i32, i32
  }
  func.func @transform_5(%arg0: i32) -> (i32, i32) {
    %c0_i32 = arith.constant 0 : i32
    %c0_i32_0 = arith.constant 0 : i32
    %c0_i32_1 = arith.constant 0 : i32
    return %c0_i32, %c0_i32_0 : i32, i32
  }
  func.func @transform_6(%arg0: i32) -> (i32, i32) {
    %c0_i32 = arith.constant 0 : i32
    %c0_i32_0 = arith.constant 0 : i32
    %c0_i32_1 = arith.constant 0 : i32
    return %c0_i32, %c0_i32_0 : i32, i32
  }
  func.func @transform_7(%arg0: i32) -> (i32, i32) {
    %c0_i32 = arith.constant 0 : i32
    %c0_i32_0 = arith.constant 0 : i32
    return %c0_i32, %arg0 : i32, i32
  }
}

</mosaic_0001>

<llo_original>
// kernel: tpu_custom_call.1
$region0: #{tpu_custom_call.1}
  #allocation0 [shape = 'u32[]', space=smem, size = 0x4, offset = 0x4, fixed_abs, tag = 'smem constant byte address 0x4 - core index']
  #allocation1 [shape = 'u32[144,128]{1,0:T(1,128)}', space=vmem, size = 0x12000, scoped, tag = 'internal scratch']
  #allocation2 [shape = 'f32[1,1]{1,0:T(1,128)S(6)}', space=smem, size = 0x200, scoped, tag = 'scoped memory for tpu_custom_call.1']
  %s0 = inlined_call_operand.vmem [shape: f32[128,96], index: 0, kind: input, shape index: {}]
  %s1 = inlined_call_operand.vmem [shape: bf16[96,256], index: 1, kind: input, shape index: {}]
  %s2 = inlined_call_operand.vmem [shape: f32[1,256], index: 2, kind: input, shape index: {}]
  %s3 = inlined_call_operand.hbm [shape: bf16[256,256], index: 3, kind: input, shape index: {}]
  %s4 = inlined_call_operand.vmem [shape: f32[1,256], index: 4, kind: input, shape index: {}]
  %s5 = inlined_call_operand.vmem [shape: bf16[8,256], index: 5, kind: input, shape index: {}]
  %s6 = inlined_call_operand.<no memory space> [shape: f32[1,1], index: 6, kind: input, shape index: {}]
  %s7 = inlined_call_operand.hbm [shape: f32[1,128], index: 7, kind: output, shape index: {}]
  %s8 = sld [smem:[#allocation0]]
  $region42: #{tpu_custom_call.1} parent=0
    _
  %s10 = ssub.s32 1, %s8
  %s11 = scalar_select 0, %s10, %s8
  %12 = sst [smem:[#allocation2]] %s6
  $region1: #{tpu_custom_call.1} parent=0
    #allocation3 [shape = 'u8[131072]{0}', space=vmem, size = 0x20000, scoped, tag = 'input window, operand 3, single buffered']
    #allocation4 [shape = 's32[1]{0}', space=sflag, size = 0x4, scoped, tag = 'scoped memory for tpu_custom_call.1']
    #allocation5 [shape = 's32[1]{0}', space=sflag, size = 0x4, scoped, tag = 'scoped memory for tpu_custom_call.1']
    #allocation6 [shape = 'u8[512]{0}', space=vmem, size = 0x400, scoped, tag = 'output window, operand 0, single buffered']
    %13 = vsyncpa [#allocation4], 0
    %14 = vsyncpa [#allocation5], 0
    // Predicated region
    $region2: #{tpu_custom_call.1} parent=1 // pred_check
      _
    $region3: #{tpu_custom_call.1} parent=1 // pred_check_branch
      %16 = sbr.rel (0) target = $region5
    $region4: #{tpu_custom_call.1} parent=1 // pred_region
      _
    $region5: #{tpu_custom_call.1} parent=1 // pred_fallthru
      _
    // Predicated region
    $region6: #{tpu_custom_call.1} parent=1 // pred_check
      _
    $region7: #{tpu_custom_call.1} parent=1 // pred_check_branch
      %18 = sbr.rel (0) target = $region9
    $region8: #{tpu_custom_call.1} parent=1 // pred_region
      _
    $region9: #{tpu_custom_call.1} parent=1 // pred_fallthru
      _
    // Predicated region
    $region10: #{tpu_custom_call.1} parent=1 // pred_check
      _
    $region11: #{tpu_custom_call.1} parent=1 // pred_check_branch
      %20 = sbr.rel (0) target = $region13
    $region12: #{tpu_custom_call.1} parent=1 // pred_region
      _
    $region13: #{tpu_custom_call.1} parent=1 // pred_fallthru
      _
    // Predicated region
    $region14: #{tpu_custom_call.1} parent=1 // pred_check
      _
    $region15: #{tpu_custom_call.1} parent=1 // pred_check_branch
      %22 = sbr.rel (0) target = $region17
    $region16: #{tpu_custom_call.1} parent=1 // pred_region
      %s24 = ssub.s32 4096, 4096
      %25 = vsyncadd [#allocation4], %s24
      %s26 = sshll.u32 [#allocation3], 4
      %s27 = int_to_ptr.vmem [resolvable:$true] %s26
      %32 = dma.hbm_to_vmem [thread:$0]  %s3, 4096, %s27, [#allocation4], 128, 128, 8
    $region17: #{tpu_custom_call.1} parent=1 // pred_fallthru
      _
    // Predicated region
    $region18: #{tpu_custom_call.1} parent=1 // pred_check
      _
    $region19: #{tpu_custom_call.1} parent=1 // pred_check_branch
      %34 = sbr.rel (0) target = $region21
    $region20: #{tpu_custom_call.1} parent=1 // pred_region
      _
    $region21: #{tpu_custom_call.1} parent=1 // pred_fallthru
      _
    // Predicated region
    $region22: #{tpu_custom_call.1} parent=1 // pred_check
      _
    $region23: #{tpu_custom_call.1} parent=1 // pred_check_branch
      %36 = sbr.rel (0) target = $region25
    $region24: #{tpu_custom_call.1} parent=1 // pred_region
      _
    $region25: #{tpu_custom_call.1} parent=1 // pred_fallthru
      _
    // Predicated region
    $region26: #{tpu_custom_call.1} parent=1 // pred_check
      _
    $region27: #{tpu_custom_call.1} parent=1 // pred_check_branch
      %38 = sbr.rel (0) target = $region29
    $region28: #{tpu_custom_call.1} parent=1 // pred_region
      _
    $region29: #{tpu_custom_call.1} parent=1 // pred_fallthru
      _
    // Predicated region
    $region30: #{tpu_custom_call.1} parent=1 // pred_check
      _
    $region31: #{tpu_custom_call.1} parent=1 // pred_check_branch
      %40 = sbr.rel (0) target = $region33
    $region32: #{tpu_custom_call.1} parent=1 // pred_region
      %41 = dma.done [#allocation4], 4096
    $region33: #{tpu_custom_call.1} parent=1 // pred_fallthru
      _
    %v43 = vld [vmem:[%s0] sm:$0xff]
    %v44 = vld [vmem:[%s0 + $0x8] sm:$0xff]
    %v45 = vld [vmem:[%s0 + $0x10] sm:$0xff]
    %v46 = vld [vmem:[%s0 + $0x18] sm:$0xff]
    %v47 = vld [vmem:[%s0 + $0x20] sm:$0xff]
    %v48 = vld [vmem:[%s0 + $0x28] sm:$0xff]
    %v49 = vld [vmem:[%s0 + $0x30] sm:$0xff]
    %v50 = vld [vmem:[%s0 + $0x38] sm:$0xff]
    %v51 = vld [vmem:[%s0 + $0x40] sm:$0xff]
    %v52 = vld [vmem:[%s0 + $0x48] sm:$0xff]
    %v53 = vld [vmem:[%s0 + $0x50] sm:$0xff]
    %v54 = vld [vmem:[%s0 + $0x58] sm:$0xff]
    %v55 = vld [vmem:[%s0 + $0x60] sm:$0xff]
    %v56 = vld [vmem:[%s0 + $0x68] sm:$0xff]
    %v57 = vld [vmem:[%s0 + $0x70] sm:$0xff]
    %v58 = vld [vmem:[%s0 + $0x78] sm:$0xff]
    %v59 = vpack.c.bf16 %v44, %v43
    %v60 = vpack.c.bf16 %v46, %v45
    %v61 = vpack.c.bf16 %v48, %v47
    %v62 = vpack.c.bf16 %v50, %v49
    %v63 = vpack.c.bf16 %v52, %v51
    %v64 = vpack.c.bf16 %v54, %v53
    %v65 = vpack.c.bf16 %v56, %v55
    %v66 = vpack.c.bf16 %v58, %v57
    %v67 = vld [vmem:[%s1] sm:$0xff]
    %v68 = vld [vmem:[%s1 + $0x8] sm:$0xff]
    %v69 = vld [vmem:[%s1 + $0x10] sm:$0xff]
    %v70 = vld [vmem:[%s1 + $0x18] sm:$0xff]
    %v71 = vld [vmem:[%s1 + $0x20] sm:$0xff]
    %v72 = vld [vmem:[%s1 + $0x28] sm:$0xff]
    %v73 = vld [vmem:[%s1 + $0x30] sm:$0xff]
    %v74 = vld [vmem:[%s1 + $0x38] sm:$0xff]
    %v75 = vld [vmem:[%s1 + $0x40] sm:$0xff]
    %v76 = vld [vmem:[%s1 + $0x48] sm:$0xff]
    %v77 = vld [vmem:[%s1 + $0x50] sm:$0xff]
    %v78 = vld [vmem:[%s1 + $0x58] sm:$0xff]
    %v79 = vld [vmem:[%s2] sm:$0x3]
    %v81 = vlaneseq
    %v82 = vshrl.u32 %v81, 7
    %v83 = vsub.s32 0, %v82
    %v84 = vrot.slane %v79, %v83
    %v85 = vlaneseq
    %v86 = vshrl.u32 %v85, 7
    %v87 = vsub.s32 1, %v86
    %v88 = vrot.slane %v79, %v87
    %v103 = vunpack.c.l.b16 %v67
    %v104 = vunpack.c.h.b16 %v67
    %v105 = vunpack.c.l.b16 %v68
    %v106 = vunpack.c.h.b16 %v68
    %v107 = vunpack.c.l.b16 %v69
    %v108 = vunpack.c.h.b16 %v69
    %v109 = vunpack.c.l.b16 %v70
    %v110 = vunpack.c.h.b16 %v70
    %v111 = vunpack.c.l.b16 %v71
    %v112 = vunpack.c.h.b16 %v71
    %v113 = vunpack.c.l.b16 %v72
    %v114 = vunpack.c.h.b16 %v72
    %v115 = vunpack.c.l.b16 %v73
    %v116 = vunpack.c.h.b16 %v73
    %v117 = vunpack.c.l.b16 %v74
    %v118 = vunpack.c.h.b16 %v74
    %v119 = vunpack.c.l.b16 %v75
    %v120 = vunpack.c.h.b16 %v75
    %v121 = vunpack.c.l.b16 %v76
    %v122 = vunpack.c.h.b16 %v76
    %v123 = vunpack.c.l.b16 %v77
    %v124 = vunpack.c.h.b16 %v77
    %v125 = vunpack.c.l.b16 %v78
    %v126 = vunpack.c.h.b16 %v78
    %v127 = vpack.c.b16 %v105, %v103
    %v128 = vpack.c.b16 %v106, %v104
    %v129 = vpack.c.b16 %v109, %v107
    %v130 = vpack.c.b16 %v110, %v108
    %v131 = vpack.c.b16 %v113, %v111
    %v132 = vpack.c.b16 %v114, %v112
    %v133 = vpack.c.b16 %v117, %v115
    %v134 = vpack.c.b16 %v118, %v116
    %v135 = vpack.c.b16 %v121, %v119
    %v136 = vpack.c.b16 %v122, %v120
    %v137 = vpack.c.b16 %v125, %v123
    %v138 = vpack.c.b16 %v126, %v124
    %vm151 = vcmask 785408
    %v153 = vsel %vm151, %v59, 0
    %v156 = vsel %vm151, %v60, 0
    %v159 = vsel %vm151, %v61, 0
    %v162 = vsel %vm151, %v62, 0
    %v165 = vsel %vm151, %v63, 0
    %v168 = vsel %vm151, %v64, 0
    %v171 = vsel %vm151, %v65, 0
    %v174 = vsel %vm151, %v66, 0
    %176 = vmatprep.subr.bf16.mxu0 %v128
    %177 = vmatpush1.bf16.msra.mxu0 %v127
    %178 = vmatprep.subr.bf16.mxu0 %v130
    %179 = vmatpush1.bf16.msra.mxu0 %v129
    %180 = vmatprep.subr.bf16.mxu0 %v132
    %181 = vmatpush1.bf16.msra.mxu0 %v131
    %182 = vmatprep.subr.bf16.mxu0 %v134
    %183 = vmatpush1.bf16.msra.mxu0 %v133
    %184 = vmatprep.subr.bf16.mxu0 %v136
    %185 = vmatpush1.bf16.msra.mxu0 %v135
    %186 = vmatprep.subr.bf16.mxu0 %v138
    %187 = vmatpush1.bf16.msra.mxu0 %v137
    %188 = vmatprep.subr.bf16.mxu0 0
    %189 = vmatpush1.bf16.msra.mxu0 0
    %190 = vmatprep.subr.bf16.mxu0 0
    %191 = vmatpush1.bf16.msra.mxu0 0
    %192 = vmatprep.subr.bf16.mxu0 0
    %193 = vmatpush1.bf16.msra.mxu0 0
    %194 = vmatprep.subr.bf16.mxu0 0
    %195 = vmatpush1.bf16.msra.mxu0 0
    %196 = vmatprep.subr.bf16.mxu0 0
    %197 = vmatpush1.bf16.msra.mxu0 0
    %198 = vmatprep.subr.bf16.mxu0 0
    %199 = vmatpush1.bf16.msra.mxu0 0
    %200 = vmatprep.subr.bf16.mxu0 0
    %201 = vmatpush1.bf16.msra.mxu0 0
    %202 = vmatprep.subr.bf16.mxu0 0
    %203 = vmatpush1.bf16.msra.mxu0 0
    %204 = vmatprep.subr.bf16.mxu0 0
    %205 = vmatpush1.bf16.msra.mxu0 0
    %206 = vmatprep.subr.bf16.mxu0 0
    %207 = vmatpush1.bf16.msra.mxu0 0
    %208 = vmatprep.mubr.bf16.mxu0 0
    %209 = vmatmul.mubr.bf16.gmra.mrb[0].mxu0 %v153
    %v210 = vpop.f32.mrb[0].mxu0
    %v211 = vadd.f32 %v84, %v210
    %v212 = vpop.f32.mrb[0].mxu0
    %v213 = vadd.f32 %v88, %v212
    %v214 = vpop.f32.mrb[0].mxu0
    %v215 = vadd.f32 %v84, %v214
    %v216 = vpop.f32.mrb[0].mxu0
    %v217 = vadd.f32 %v88, %v216
    %218 = vmatprep.mubr.bf16.mxu0 0
    %219 = vmatmul.mubr.bf16.gmra.mrb[0].mxu0 %v156
    %v220 = vpop.f32.mrb[0].mxu0
    %v221 = vadd.f32 %v84, %v220
    %v222 = vpop.f32.mrb[0].mxu0
    %v223 = vadd.f32 %v88, %v222
    %v224 = vpop.f32.mrb[0].mxu0
    %v225 = vadd.f32 %v84, %v224
    %v226 = vpop.f32.mrb[0].mxu0
    %v227 = vadd.f32 %v88, %v226
    %228 = vmatprep.mubr.bf16.mxu0 0
    %229 = vmatmul.mubr.bf16.gmra.mrb[0].mxu0 %v159
    %v230 = vpop.f32.mrb[0].mxu0
    %v231 = vadd.f32 %v84, %v230
    %v232 = vpop.f32.mrb[0].mxu0
    %v233 = vadd.f32 %v88, %v232
    %v234 = vpop.f32.mrb[0].mxu0
    %v235 = vadd.f32 %v84, %v234
    %v236 = vpop.f32.mrb[0].mxu0
    %v237 = vadd.f32 %v88, %v236
    %238 = vmatprep.mubr.bf16.mxu0 0
    %239 = vmatmul.mubr.bf16.gmra.mrb[0].mxu0 %v162
    %v240 = vpop.f32.mrb[0].mxu0
    %v241 = vadd.f32 %v84, %v240
    %v242 = vpop.f32.mrb[0].mxu0
    %v243 = vadd.f32 %v88, %v242
    %v244 = vpop.f32.mrb[0].mxu0
    %v245 = vadd.f32 %v84, %v244
    %v246 = vpop.f32.mrb[0].mxu0
    %v247 = vadd.f32 %v88, %v246
    %248 = vmatprep.mubr.bf16.mxu0 0
    %249 = vmatmul.mubr.bf16.gmra.mrb[0].mxu0 %v165
    %v250 = vpop.f32.mrb[0].mxu0
    %v251 = vadd.f32 %v84, %v250
    %v252 = vpop.f32.mrb[0].mxu0
    %v253 = vadd.f32 %v88, %v252
    %v254 = vpop.f32.mrb[0].mxu0
    %v255 = vadd.f32 %v84, %v254
    %v256 = vpop.f32.mrb[0].mxu0
    %v257 = vadd.f32 %v88, %v256
    %258 = vmatprep.mubr.bf16.mxu0 0
    %259 = vmatmul.mubr.bf16.gmra.mrb[0].mxu0 %v168
    %v260 = vpop.f32.mrb[0].mxu0
    %v261 = vadd.f32 %v84, %v260
    %v262 = vpop.f32.mrb[0].mxu0
    %v263 = vadd.f32 %v88, %v262
    %v264 = vpop.f32.mrb[0].mxu0
    %v265 = vadd.f32 %v84, %v264
    %v266 = vpop.f32.mrb[0].mxu0
    %v267 = vadd.f32 %v88, %v266
    %268 = vmatprep.mubr.bf16.mxu0 0
    %269 = vmatmul.mubr.bf16.gmra.mrb[0].mxu0 %v171
    %v270 = vpop.f32.mrb[0].mxu0
    %v271 = vadd.f32 %v84, %v270
    %v272 = vpop.f32.mrb[0].mxu0
    %v273 = vadd.f32 %v88, %v272
    %v274 = vpop.f32.mrb[0].mxu0
    %v275 = vadd.f32 %v84, %v274
    %v276 = vpop.f32.mrb[0].mxu0
    %v277 = vadd.f32 %v88, %v276
    %278 = vmatprep.mubr.bf16.mxu0 0
    %279 = vmatmul.mubr.bf16.gmra.mrb[0].mxu0 %v174
    %v280 = vpop.f32.mrb[0].mxu0
    %v281 = vadd.f32 %v84, %v280
    %v282 = vpop.f32.mrb[0].mxu0
    %v283 = vadd.f32 %v88, %v282
    %v284 = vpop.f32.mrb[0].mxu0
    %v285 = vadd.f32 %v84, %v284
    %v286 = vpop.f32.mrb[0].mxu0
    %v287 = vadd.f32 %v88, %v286
    %288 = vdwg.mxu0
    %v289 = vmul.f32 %v211, 0.2
    %v290 = vmul.f32 %v213, 0.2
    %v291 = vmul.f32 %v215, 0.2
    %v292 = vmul.f32 %v217, 0.2
    %v293 = vmul.f32 %v221, 0.2
    %v294 = vmul.f32 %v223, 0.2
    %v295 = vmul.f32 %v225, 0.2
    %v296 = vmul.f32 %v227, 0.2
    %v297 = vmul.f32 %v231, 0.2
    %v298 = vmul.f32 %v233, 0.2
    %v299 = vmul.f32 %v235, 0.2
    %v300 = vmul.f32 %v237, 0.2
    %v301 = vmul.f32 %v241, 0.2
    %v302 = vmul.f32 %v243, 0.2
    %v303 = vmul.f32 %v245, 0.2
    %v304 = vmul.f32 %v247, 0.2
    %v305 = vmul.f32 %v251, 0.2
    %v306 = vmul.f32 %v253, 0.2
    %v307 = vmul.f32 %v255, 0.2
    %v308 = vmul.f32 %v257, 0.2
    %v309 = vmul.f32 %v261, 0.2
    %v310 = vmul.f32 %v263, 0.2
    %v311 = vmul.f32 %v265, 0.2
    %v312 = vmul.f32 %v267, 0.2
    %v313 = vmul.f32 %v271, 0.2
    %v314 = vmul.f32 %v273, 0.2
    %v315 = vmul.f32 %v275, 0.2
    %v316 = vmul.f32 %v277, 0.2
    %v317 = vmul.f32 %v281, 0.2
    %v318 = vmul.f32 %v283, 0.2
    %v319 = vmul.f32 %v285, 0.2
    %v320 = vmul.f32 %v287, 0.2
    %v321 = vmax.f32 %v211, %v289
    %v322 = vmax.f32 %v213, %v290
    %v323 = vmax.f32 %v215, %v291
    %v324 = vmax.f32 %v217, %v292
    %v325 = vmax.f32 %v221, %v293
    %v326 = vmax.f32 %v223, %v294
    %v327 = vmax.f32 %v225, %v295
    %v328 = vmax.f32 %v227, %v296
    %v329 = vmax.f32 %v231, %v297
    %v330 = vmax.f32 %v233, %v298
    %v331 = vmax.f32 %v235, %v299
    %v332 = vmax.f32 %v237, %v300
    %v333 = vmax.f32 %v241, %v301
    %v334 = vmax.f32 %v243, %v302
    %v335 = vmax.f32 %v245, %v303
    %v336 = vmax.f32 %v247, %v304
    %v337 = vmax.f32 %v251, %v305
    %v338 = vmax.f32 %v253, %v306
    %v339 = vmax.f32 %v255, %v307
    %v340 = vmax.f32 %v257, %v308
    %v341 = vmax.f32 %v261, %v309
    %v342 = vmax.f32 %v263, %v310
    %v343 = vmax.f32 %v265, %v311
    %v344 = vmax.f32 %v267, %v312
    %v345 = vmax.f32 %v271, %v313
    %v346 = vmax.f32 %v273, %v314
    %v347 = vmax.f32 %v275, %v315
    %v348 = vmax.f32 %v277, %v316
    %v349 = vmax.f32 %v281, %v317
    %v350 = vmax.f32 %v283, %v318
    %v351 = vmax.f32 %v285, %v319
    %v352 = vmax.f32 %v287, %v320
    %v353 = vpack.c.bf16 %v323, %v321
    %v354 = vpack.c.bf16 %v324, %v322
    %v355 = vpack.c.bf16 %v327, %v325
    %v356 = vpack.c.bf16 %v328, %v326
    %v357 = vpack.c.bf16 %v331, %v329
    %v358 = vpack.c.bf16 %v332, %v330
    %v359 = vpack.c.bf16 %v335, %v333
    %v360 = vpack.c.bf16 %v336, %v334
    %v361 = vpack.c.bf16 %v339, %v337
    %v362 = vpack.c.bf16 %v340, %v338
    %v363 = vpack.c.bf16 %v343, %v341
    %v364 = vpack.c.bf16 %v344, %v342
    %v365 = vpack.c.bf16 %v347, %v345
    %v366 = vpack.c.bf16 %v348, %v346
    %v367 = vpack.c.bf16 %v351, %v349
    %v368 = vpack.c.bf16 %v352, %v350
    %v369 = vld [vmem:[#allocation3] sm:$0xff]
    %v370 = vld [vmem:[#allocation3 + $0x8] sm:$0xff]
    %v371 = vld [vmem:[#allocation3 + $0x10] sm:$0xff]
    %v372 = vld [vmem:[#allocation3 + $0x18] sm:$0xff]
    %v373 = vld [vmem:[#allocation3 + $0x20] sm:$0xff]
    %v374 = vld [vmem:[#allocation3 + $0x28] sm:$0xff]
    %v375 = vld [vmem:[#allocation3 + $0x30] sm:$0xff]
    %v376 = vld [vmem:[#allocation3 + $0x38] sm:$0xff]
    %v377 = vld [vmem:[#allocation3 + $0x40] sm:$0xff]
    %v378 = vld [vmem:[#allocation3 + $0x48] sm:$0xff]
    %v379 = vld [vmem:[#allocation3 + $0x50] sm:$0xff]
    %v380 = vld [vmem:[#allocation3 + $0x58] sm:$0xff]
    %v381 = vld [vmem:[#allocation3 + $0x60] sm:$0xff]
    %v382 = vld [vmem:[#allocation3 + $0x68] sm:$0xff]
    %v383 = vld [vmem:[#allocation3 + $0x70] sm:$0xff]
    %v384 = vld [vmem:[#allocation3 + $0x78] sm:$0xff]
    %v385 = vld [vmem:[#allocation3 + $0x80] sm:$0xff]
    %v386 = vld [vmem:[#allocation3 + $0x88] sm:$0xff]
    %v387 = vld [vmem:[#allocation3 + $0x90] sm:$0xff]
    %v388 = vld [vmem:[#allocation3 + $0x98] sm:$0xff]
    %v389 = vld [vmem:[#allocation3 + $0xa0] sm:$0xff]
    %v390 = vld [vmem:[#allocation3 + $0xa8] sm:$0xff]
    %v391 = vld [vmem:[#allocation3 + $0xb0] sm:$0xff]
    %v392 = vld [vmem:[#allocation3 + $0xb8] sm:$0xff]
    %v393 = vld [vmem:[#allocation3 + $0xc0] sm:$0xff]
    %v394 = vld [vmem:[#allocation3 + $0xc8] sm:$0xff]
    %v395 = vld [vmem:[#allocation3 + $0xd0] sm:$0xff]
    %v396 = vld [vmem:[#allocation3 + $0xd8] sm:$0xff]
    %v397 = vld [vmem:[#allocation3 + $0xe0] sm:$0xff]
    %v398 = vld [vmem:[#allocation3 + $0xe8] sm:$0xff]
    %v399 = vld [vmem:[#allocation3 + $0xf0] sm:$0xff]
    %v400 = vld [vmem:[#allocation3 + $0xf8] sm:$0xff]
    %v401 = vld [vmem:[%s4] sm:$0x3]
    %v403 = vlaneseq
    %v404 = vshrl.u32 %v403, 7
    %v405 = vsub.s32 0, %v404
    %v406 = vrot.slane %v401, %v405
    %v407 = vlaneseq
    %v408 = vshrl.u32 %v407, 7
    %v409 = vsub.s32 1, %v408
    %v410 = vrot.slane %v401, %v409
    %v445 = vunpack.c.l.b16 %v369
    %v446 = vunpack.c.h.b16 %v369
    %v447 = vunpack.c.l.b16 %v370
    %v448 = vunpack.c.h.b16 %v370
    %v449 = vunpack.c.l.b16 %v371
    %v450 = vunpack.c.h.b16 %v371
    %v451 = vunpack.c.l.b16 %v372
    %v452 = vunpack.c.h.b16 %v372
    %v453 = vunpack.c.l.b16 %v373
    %v454 = vunpack.c.h.b16 %v373
    %v455 = vunpack.c.l.b16 %v374
    %v456 = vunpack.c.h.b16 %v374
    %v457 = vunpack.c.l.b16 %v375
    %v458 = vunpack.c.h.b16 %v375
    %v459 = vunpack.c.l.b16 %v376
    %v460 = vunpack.c.h.b16 %v376
    %v461 = vunpack.c.l.b16 %v377
    %v462 = vunpack.c.h.b16 %v377
    %v463 = vunpack.c.l.b16 %v378
    %v464 = vunpack.c.h.b16 %v378
    %v465 = vunpack.c.l.b16 %v379
    %v466 = vunpack.c.h.b16 %v379
    %v467 = vunpack.c.l.b16 %v380
    %v468 = vunpack.c.h.b16 %v380
    %v469 = vunpack.c.l.b16 %v381
    %v470 = vunpack.c.h.b16 %v381
    %v471 = vunpack.c.l.b16 %v382
    %v472 = vunpack.c.h.b16 %v382
    %v473 = vunpack.c.l.b16 %v383
    %v474 = vunpack.c.h.b16 %v383
    %v475 = vunpack.c.l.b16 %v384
    %v476 = vunpack.c.h.b16 %v384
    %v477 = vunpack.c.l.b16 %v385
    %v478 = vunpack.c.h.b16 %v385
    %v479 = vunpack.c.l.b16 %v386
    %v480 = vunpack.c.h.b16 %v386
    %v481 = vunpack.c.l.b16 %v387
    %v482 = vunpack.c.h.b16 %v387
    %v483 = vunpack.c.l.b16 %v388
    %v484 = vunpack.c.h.b16 %v388
    %v485 = vunpack.c.l.b16 %v389
    %v486 = vunpack.c.h.b16 %v389
    %v487 = vunpack.c.l.b16 %v390
    %v488 = vunpack.c.h.b16 %v390
    %v489 = vunpack.c.l.b16 %v391
    %v490 = vunpack.c.h.b16 %v391
    %v491 = vunpack.c.l.b16 %v392
    %v492 = vunpack.c.h.b16 %v392
    %v493 = vunpack.c.l.b16 %v393
    %v494 = vunpack.c.h.b16 %v393
    %v495 = vunpack.c.l.b16 %v394
    %v496 = vunpack.c.h.b16 %v394
    %v497 = vunpack.c.l.b16 %v395
    %v498 = vunpack.c.h.b16 %v395
    %v499 = vunpack.c.l.b16 %v396
    %v500 = vunpack.c.h.b16 %v396
    %v501 = vunpack.c.l.b16 %v397
    %v502 = vunpack.c.h.b16 %v397
    %v503 = vunpack.c.l.b16 %v398
    %v504 = vunpack.c.h.b16 %v398
    %v505 = vunpack.c.l.b16 %v399
    %v506 = vunpack.c.h.b16 %v399
    %v507 = vunpack.c.l.b16 %v400
    %v508 = vunpack.c.h.b16 %v400
    %v509 = vpack.c.b16 %v447, %v445
    %v510 = vpack.c.b16 %v448, %v446
    %v511 = vpack.c.b16 %v451, %v449
    %v512 = vpack.c.b16 %v452, %v450
    %v513 = vpack.c.b16 %v455, %v453
    %v514 = vpack.c.b16 %v456, %v454
    %v515 = vpack.c.b16 %v459, %v457
    %v516 = vpack.c.b16 %v460, %v458
    %v517 = vpack.c.b16 %v463, %v461
    %v518 = vpack.c.b16 %v464, %v462
    %v519 = vpack.c.b16 %v467, %v465
    %v520 = vpack.c.b16 %v468, %v466
    %v521 = vpack.c.b16 %v471, %v469
    %v522 = vpack.c.b16 %v472, %v470
    %v523 = vpack.c.b16 %v475, %v473
    %v524 = vpack.c.b16 %v476, %v474
    %v525 = vpack.c.b16 %v479, %v477
    %v526 = vpack.c.b16 %v480, %v478
    %v527 = vpack.c.b16 %v483, %v481
    %v528 = vpack.c.b16 %v484, %v482
    %v529 = vpack.c.b16 %v487, %v485
    %v530 = vpack.c.b16 %v488, %v486
    %v531 = vpack.c.b16 %v491, %v489
    %v532 = vpack.c.b16 %v492, %v490
    %v533 = vpack.c.b16 %v495, %v493
    %v534 = vpack.c.b16 %v496, %v494
    %v535 = vpack.c.b16 %v499, %v497
    %v536 = vpack.c.b16 %v500, %v498
    %v537 = vpack.c.b16 %v503, %v501
    %v538 = vpack.c.b16 %v504, %v502
    %v539 = vpack.c.b16 %v507, %v505
    %v540 = vpack.c.b16 %v508, %v506
    %573 = vmatprep.subr.bf16.mxu0 %v510
    %574 = vmatpush1.bf16.msra.mxu0 %v509
    %575 = vmatprep.subr.bf16.mxu0 %v512
    %576 = vmatpush1.bf16.msra.mxu0 %v511
    %577 = vmatprep.subr.bf16.mxu0 %v514
    %578 = vmatpush1.bf16.msra.mxu0 %v513
    %579 = vmatprep.subr.bf16.mxu0 %v516
    %580 = vmatpush1.bf16.msra.mxu0 %v515
    %581 = vmatprep.subr.bf16.mxu0 %v518
    %582 = vmatpush1.bf16.msra.mxu0 %v517
    %583 = vmatprep.subr.bf16.mxu0 %v520
    %584 = vmatpush1.bf16.msra.mxu0 %v519
    %585 = vmatprep.subr.bf16.mxu0 %v522
    %586 = vmatpush1.bf16.msra.mxu0 %v521
    %587 = vmatprep.subr.bf16.mxu0 %v524
    %588 = vmatpush1.bf16.msra.mxu0 %v523
    %589 = vmatprep.subr.bf16.mxu0 %v526
    %590 = vmatpush1.bf16.msra.mxu0 %v525
    %591 = vmatprep.subr.bf16.mxu0 %v528
    %592 = vmatpush1.bf16.msra.mxu0 %v527
    %593 = vmatprep.subr.bf16.mxu0 %v530
    %594 = vmatpush1.bf16.msra.mxu0 %v529
    %595 = vmatprep.subr.bf16.mxu0 %v532
    %596 = vmatpush1.bf16.msra.mxu0 %v531
    %597 = vmatprep.subr.bf16.mxu0 %v534
    %598 = vmatpush1.bf16.msra.mxu0 %v533
    %599 = vmatprep.subr.bf16.mxu0 %v536
    %600 = vmatpush1.bf16.msra.mxu0 %v535
    %601 = vmatprep.subr.bf16.mxu0 %v538
    %602 = vmatpush1.bf16.msra.mxu0 %v537
    %603 = vmatprep.subr.bf16.mxu0 %v540
    %604 = vmatpush1.bf16.msra.mxu0 %v539
    %605 = vmatprep.mubr.bf16.mxu0 %v354
    %606 = vmatmul.mubr.bf16.gmra.mrb[0].mxu0 %v353
    %v607 = vpop.f32.mrb[0].mxu0
    %v608 = vadd.f32 %v406, %v607
    %v609 = vpop.f32.mrb[0].mxu0
    %v610 = vadd.f32 %v410, %v609
    %v611 = vpop.f32.mrb[0].mxu0
    %v612 = vadd.f32 %v406, %v611
    %v613 = vpop.f32.mrb[0].mxu0
    %v614 = vadd.f32 %v410, %v613
    %615 = vmatprep.mubr.bf16.mxu0 %v356
    %616 = vmatmul.mubr.bf16.gmra.mrb[0].mxu0 %v355
    %v617 = vpop.f32.mrb[0].mxu0
    %v618 = vadd.f32 %v406, %v617
    %v619 = vpop.f32.mrb[0].mxu0
    %v620 = vadd.f32 %v410, %v619
    %v621 = vpop.f32.mrb[0].mxu0
    %v622 = vadd.f32 %v406, %v621
    %v623 = vpop.f32.mrb[0].mxu0
    %v624 = vadd.f32 %v410, %v623
    %625 = vmatprep.mubr.bf16.mxu0 %v358
    %626 = vmatmul.mubr.bf16.gmra.mrb[0].mxu0 %v357
    %v627 = vpop.f32.mrb[0].mxu0
    %v628 = vadd.f32 %v406, %v627
    %v629 = vpop.f32.mrb[0].mxu0
    %v630 = vadd.f32 %v410, %v629
    %v631 = vpop.f32.mrb[0].mxu0
    %v632 = vadd.f32 %v406, %v631
    %v633 = vpop.f32.mrb[0].mxu0
    %v634 = vadd.f32 %v410, %v633
    %635 = vmatprep.mubr.bf16.mxu0 %v360
    %636 = vmatmul.mubr.bf16.gmra.mrb[0].mxu0 %v359
    %v637 = vpop.f32.mrb[0].mxu0
    %v638 = vadd.f32 %v406, %v637
    %v639 = vpop.f32.mrb[0].mxu0
    %v640 = vadd.f32 %v410, %v639
    %v641 = vpop.f32.mrb[0].mxu0
    %v642 = vadd.f32 %v406, %v641
    %v643 = vpop.f32.mrb[0].mxu0
    %v644 = vadd.f32 %v410, %v643
    %645 = vmatprep.mubr.bf16.mxu0 %v362
    %646 = vmatmul.mubr.bf16.gmra.mrb[0].mxu0 %v361
    %v647 = vpop.f32.mrb[0].mxu0
    %v648 = vadd.f32 %v406, %v647
    %v649 = vpop.f32.mrb[0].mxu0
    %v650 = vadd.f32 %v410, %v649
    %v651 = vpop.f32.mrb[0].mxu0
    %v652 = vadd.f32 %v406, %v651
    %v653 = vpop.f32.mrb[0].mxu0
    %v654 = vadd.f32 %v410, %v653
    %655 = vmatprep.mubr.bf16.mxu0 %v364
    %656 = vmatmul.mubr.bf16.gmra.mrb[0].mxu0 %v363
    %v657 = vpop.f32.mrb[0].mxu0
    %v658 = vadd.f32 %v406, %v657
    %v659 = vpop.f32.mrb[0].mxu0
    %v660 = vadd.f32 %v410, %v659
    %v661 = vpop.f32.mrb[0].mxu0
    %v662 = vadd.f32 %v406, %v661
    %v663 = vpop.f32.mrb[0].mxu0
    %v664 = vadd.f32 %v410, %v663
    %665 = vmatprep.mubr.bf16.mxu0 %v366
    %666 = vmatmul.mubr.bf16.gmra.mrb[0].mxu0 %v365
    %v667 = vpop.f32.mrb[0].mxu0
    %v668 = vadd.f32 %v406, %v667
    %v669 = vpop.f32.mrb[0].mxu0
    %v670 = vadd.f32 %v410, %v669
    %v671 = vpop.f32.mrb[0].mxu0
    %v672 = vadd.f32 %v406, %v671
    %v673 = vpop.f32.mrb[0].mxu0
    %v674 = vadd.f32 %v410, %v673
    %675 = vmatprep.mubr.bf16.mxu0 %v368
    %676 = vmatmul.mubr.bf16.gmra.mrb[0].mxu0 %v367
    %v677 = vpop.f32.mrb[0].mxu0
    %v678 = vadd.f32 %v406, %v677
    %v679 = vpop.f32.mrb[0].mxu0
    %v680 = vadd.f32 %v410, %v679
    %v681 = vpop.f32.mrb[0].mxu0
    %v682 = vadd.f32 %v406, %v681
    %v683 = vpop.f32.mrb[0].mxu0
    %v684 = vadd.f32 %v410, %v683
    %685 = vdwg.mxu0
    %v686 = vmul.f32 %v608, 0.2
    %v687 = vmul.f32 %v610, 0.2
    %v688 = vmul.f32 %v612, 0.2
    %v689 = vmul.f32 %v614, 0.2
    %v690 = vmul.f32 %v618, 0.2
    %v691 = vmul.f32 %v620, 0.2
    %v692 = vmul.f32 %v622, 0.2
    %v693 = vmul.f32 %v624, 0.2
    %v694 = vmul.f32 %v628, 0.2
    %v695 = vmul.f32 %v630, 0.2
    %v696 = vmul.f32 %v632, 0.2
    %v697 = vmul.f32 %v634, 0.2
    %v698 = vmul.f32 %v638, 0.2
    %v699 = vmul.f32 %v640, 0.2
    %v700 = vmul.f32 %v642, 0.2
    %v701 = vmul.f32 %v644, 0.2
    %v702 = vmul.f32 %v648, 0.2
    %v703 = vmul.f32 %v650, 0.2
    %v704 = vmul.f32 %v652, 0.2
    %v705 = vmul.f32 %v654, 0.2
    %v706 = vmul.f32 %v658, 0.2
    %v707 = vmul.f32 %v660, 0.2
    %v708 = vmul.f32 %v662, 0.2
    %v709 = vmul.f32 %v664, 0.2
    %v710 = vmul.f32 %v668, 0.2
    %v711 = vmul.f32 %v670, 0.2
    %v712 = vmul.f32 %v672, 0.2
    %v713 = vmul.f32 %v674, 0.2
    %v714 = vmul.f32 %v678, 0.2
    %v715 = vmul.f32 %v680, 0.2
    %v716 = vmul.f32 %v682, 0.2
    %v717 = vmul.f32 %v684, 0.2
    %v718 = vmax.f32 %v608, %v686
    %v719 = vmax.f32 %v610, %v687
    %v720 = vmax.f32 %v612, %v688
    %v721 = vmax.f32 %v614, %v689
    %v722 = vmax.f32 %v618, %v690
    %v723 = vmax.f32 %v620, %v691
    %v724 = vmax.f32 %v622, %v692
    %v725 = vmax.f32 %v624, %v693
    %v726 = vmax.f32 %v628, %v694
    %v727 = vmax.f32 %v630, %v695
    %v728 = vmax.f32 %v632, %v696
    %v729 = vmax.f32 %v634, %v697
    %v730 = vmax.f32 %v638, %v698
    %v731 = vmax.f32 %v640, %v699
    %v732 = vmax.f32 %v642, %v700
    %v733 = vmax.f32 %v644, %v701
    %v734 = vmax.f32 %v648, %v702
    %v735 = vmax.f32 %v650, %v703
    %v736 = vmax.f32 %v652, %v704
    %v737 = vmax.f32 %v654, %v705
    %v738 = vmax.f32 %v658, %v706
    %v739 = vmax.f32 %v660, %v707
    %v740 = vmax.f32 %v662, %v708
    %v741 = vmax.f32 %v664, %v709
    %v742 = vmax.f32 %v668, %v710
    %v743 = vmax.f32 %v670, %v711
    %v744 = vmax.f32 %v672, %v712
    %v745 = vmax.f32 %v674, %v713
    %v746 = vmax.f32 %v678, %v714
    %v747 = vmax.f32 %v680, %v715
    %v748 = vmax.f32 %v682, %v716
    %v749 = vmax.f32 %v684, %v717
    %v750 = vld [vmem:[%s5] sm:$0xff]
    %v751 = vpack.c.bf16 %v720, %v718
    %v752 = vpack.c.bf16 %v721, %v719
    %v753 = vpack.c.bf16 %v724, %v722
    %v754 = vpack.c.bf16 %v725, %v723
    %v755 = vpack.c.bf16 %v728, %v726
    %v756 = vpack.c.bf16 %v729, %v727
    %v757 = vpack.c.bf16 %v732, %v730
    %v758 = vpack.c.bf16 %v733, %v731
    %v759 = vpack.c.bf16 %v736, %v734
    %v760 = vpack.c.bf16 %v737, %v735
    %v761 = vpack.c.bf16 %v740, %v738
    %v762 = vpack.c.bf16 %v741, %v739
    %v763 = vpack.c.bf16 %v744, %v742
    %v764 = vpack.c.bf16 %v745, %v743
    %v765 = vpack.c.bf16 %v748, %v746
    %v766 = vpack.c.bf16 %v749, %v747
    %v768 = vunpack.c.l.b16 %v750
    %v769 = vunpack.c.h.b16 %v750
    %v770 = vpack.c.b16 %v768, %v768
    %v771 = vpack.c.b16 %v769, %v769
    %774 = vmatprep.subr.bf16.mxu0 %v752
    %775 = vmatpush1.bf16.xpose.msra.mxu0 %v751
    %776 = vmatprep.subr.bf16.mxu0 %v754
    %777 = vmatpush1.bf16.xpose.msra.mxu0 %v753
    %778 = vmatprep.subr.bf16.mxu0 %v756
    %779 = vmatpush1.bf16.xpose.msra.mxu0 %v755
    %780 = vmatprep.subr.bf16.mxu0 %v758
    %781 = vmatpush1.bf16.xpose.msra.mxu0 %v757
    %782 = vmatprep.subr.bf16.mxu0 %v760
    %783 = vmatpush1.bf16.xpose.msra.mxu0 %v759
    %784 = vmatprep.subr.bf16.mxu0 %v762
    %785 = vmatpush1.bf16.xpose.msra.mxu0 %v761
    %786 = vmatprep.subr.bf16.mxu0 %v764
    %787 = vmatpush1.bf16.xpose.msra.mxu0 %v763
    %788 = vmatprep.subr.bf16.mxu0 %v766
    %789 = vmatpush1.bf16.xpose.msra.mxu0 %v765
    %790 = vmatprep.subr.bf16.mxu0 0
    %791 = vmatpush1.bf16.xpose.msra.mxu0 0
    %792 = vmatprep.subr.bf16.mxu0 0
    %793 = vmatpush1.bf16.xpose.msra.mxu0 0
    %794 = vmatprep.subr.bf16.mxu0 0
    %795 = vmatpush1.bf16.xpose.msra.mxu0 0
    %796 = vmatprep.subr.bf16.mxu0 0
    %797 = vmatpush1.bf16.xpose.msra.mxu0 0
    %798 = vmatprep.subr.bf16.mxu0 0
    %799 = vmatpush1.bf16.xpose.msra.mxu0 0
    %800 = vmatprep.subr.bf16.mxu0 0
    %801 = vmatpush1.bf16.xpose.msra.mxu0 0
    %802 = vmatprep.subr.bf16.mxu0 0
    %803 = vmatpush1.bf16.xpose.msra.mxu0 0
    %804 = vmatprep.subr.bf16.mxu0 0
    %805 = vmatpush1.bf16.xpose.msra.mxu0 0
    %806 = vmatprep.mubr.bf16.mxu0 %v771
    %807 = vmatmul.mubr.bf16.gmra.mrb[0].mxu0 %v770
    %v808 = vpop.f32.mrb[0].mxu0
    %v809 = vadd.f32 0.0, %v808
    %v810 = vpop.f32.mrb[0].mxu0
    %v811 = vpop.f32.mrb[0].mxu0
    %v812 = vpop.f32.mrb[0].mxu0
    %813 = vdwg.mxu0
    %s814 = sld [smem:[#allocation2]]
    %v815 = vstv %s814
    %v816 = vadd.f32 %v809, %v815
    %v817 = vxor.u32 %v816, 2147483648
    %v818 = vmul.f32 %v817, 1.442695
    %v819 = vpow.pop %v818
    %v820 = vadd.f32 %v819, 1.0
    %v821 = vrcp.pop %v820
    %v822 = vmul.f32 1.0, %v821
    %823 = vst [vmem:[#allocation6] sm:$0x1] %v822
    // Predicated region
    $region34: #{tpu_custom_call.1} parent=1 // pred_check
      _
    $region35: #{tpu_custom_call.1} parent=1 // pred_check_branch
      %825 = sbr.rel (0) target = $region37
    $region36: #{tpu_custom_call.1} parent=1 // pred_region
      %s827 = ssub.s32 16, 16
      %828 = vsyncadd [#allocation5], %s827
      %s830 = sshll.u32 [#allocation6], 4
      %s831 = int_to_ptr.vmem [resolvable:$true] %s830
      %833 = dma.vmem_to_hbm [thread:$0]  %s831, 16, %s7, [#allocation5]
    $region37: #{tpu_custom_call.1} parent=1 // pred_fallthru
      _
    // Predicated region
    $region38: #{tpu_custom_call.1} parent=1 // pred_check
      _
    $region39: #{tpu_custom_call.1} parent=1 // pred_check_branch
      %835 = sbr.rel (0) target = $region41
    $region40: #{tpu_custom_call.1} parent=1 // pred_region
      %836 = dma.done [#allocation5], 16
    $region41: #{tpu_custom_call.1} parent=1 // pred_fallthru
      _
    %837 = vsyncpa [#allocation4], 1
    %838 = vsyncpa [#allocation5], 1

</llo_original>
